<compile_context>
chip_gen: v7x
topology: tpu7x:2x2x1
jax: 0.10.0
libtpu: 0.0.40
codegen_flags: <defaults>
</compile_context>

<pallas_src>
import jax
import jax.numpy as jnp
from jax.experimental import pallas as pl
from jax.experimental.pallas import tpu as pltpu

_MIB = 1024 * 1024


def _vmem_capacity_bytes():
    """Physical VMEM capacity of the attached TPU (conservative fallback)."""
    try:
        return int(pltpu.get_tpu_info().vmem_capacity_bytes)
    except Exception:
        return 64 * _MIB  # v7x per-TensorCore capacity (smallest of v5e/v6e/v7x)


def _largest_aligned_divisor(n, cap, align=8):
    """Largest multiple of `align` dividing n and <= cap (n assumed multiple of align)."""
    cap = max(align, min(n, int(cap)))
    best = align
    for t in range(align, cap + 1, align):
        if n % t == 0:
            best = t
    return best


def _pick_batch_tile(B, max_tb):
    """Largest 8-multiple divisor of B (<= max_tb); prefer leaving >= 2 batch tiles."""
    if B % 8 != 0:
        return B  # full-extent batch block (still legal: tb == B)
    cands = [t for t in range(8, min(B, int(max_tb)) + 1, 8) if B % t == 0]
    if not cands:
        return B
    two_tile = [t for t in cands if B // t >= 2]  # keep both v7x TCs busy when possible
    return max(two_tile) if two_tile else max(cands)


def _gate_body(tr_ref, ti_ref, gr_ref, gi_ref, wt_ref, b_ref, out_ref, acc_ref,
               *, inv_s, ts, gate_resident, fuse_conv):
    si = pl.program_id(1)

    @pl.when(si == 0)
    def _():
        acc_ref[...] = jnp.zeros_like(acc_ref)

    if gate_resident:
        # Gate lives fully in VMEM (constant index map); slice the current seq window.
        off = pl.multiple_of(si * ts, 8)
        gr = gr_ref[pl.ds(off, ts), :]
        gi = gi_ref[pl.ds(off, ts), :]
    else:
        gr = gr_ref[...]
        gi = gi_ref[...]

    # All math in f32 regardless of streaming dtype (preserves f32 accumulation).
    tr = tr_ref[...].astype(jnp.float32)
    ti = ti_ref[...].astype(jnp.float32)
    gr = gr.astype(jnp.float32)[None, :, :]
    gi = gi.astype(jnp.float32)[None, :, :]

    # Re(text * gate) = tr*gr - ti*gi, gate broadcast over the batch tile.
    gated = tr * gr - ti * gi                       # (TB, TS, D)
    acc_ref[...] += jnp.sum(gated, axis=1)          # (TB, D) f32 accumulator

    @pl.when(si == pl.num_programs(1) - 1)
    def _():
        pooled = acc_ref[...] * inv_s               # AvgPool1d(kernel_size=s)
        if fuse_conv:
            # Conv1d(d_model, d_model, kernel_size=1) == pooled @ W^T + b
            y = jnp.dot(pooled, wt_ref[...],
                        preferred_element_type=jnp.float32) + b_ref[...]
        else:
            y = pooled
        out_ref[...] = y.astype(out_ref.dtype)


def _make_kernel(inv_s, ts, gate_resident, fuse_conv):
    if fuse_conv:
        def kernel(tr, ti, gr, gi, wt, b, out, acc):
            _gate_body(tr, ti, gr, gi, wt, b, out, acc, inv_s=inv_s, ts=ts,
                       gate_resident=gate_resident, fuse_conv=True)
    else:
        def kernel(tr, ti, gr, gi, out, acc):
            _gate_body(tr, ti, gr, gi, None, None, out, acc, inv_s=inv_s, ts=ts,
                       gate_resident=gate_resident, fuse_conv=False)
    return kernel


def text2image_gate(text_real, text_imag, select_para, conv_w, conv_b, *, stream_dtype=None):
    """Forward pass of Text2ImageGate.

    text_real, text_imag : (B, S, D) float  -- real/imag parts of the complex text
    select_para          : (S, D, 2) float  -- torch.view_as_complex layout
    conv_w               : (D, D, 1) float  -- Conv1d weight (out, in, k=1)
    conv_b               : (D,)      float  -- Conv1d bias
    stream_dtype         : optional narrower dtype (e.g. bf16) for the streamed text/gate
    returns              : (B, 1, D)
    """
    B, S, D = text_real.shape
    assert select_para.shape == (S, D, 2), "module requires seq_len == s"
    out_dtype = text_real.dtype
    t_dtype = jnp.dtype(stream_dtype) if stream_dtype is not None else jnp.dtype(out_dtype)

    gate_real = select_para[..., 0]
    gate_imag = select_para[..., 1]

    # Zero-pad the sequence axis up to a multiple of 8 (zeros add nothing to the sum,
    # so inv_s = 1/S below is unchanged).
    s_pad = ((S + 7) // 8) * 8
    if s_pad != S:
        pad = s_pad - S
        text_real = jnp.pad(text_real, ((0, 0), (0, pad), (0, 0)))
        text_imag = jnp.pad(text_imag, ((0, 0), (0, pad), (0, 0)))
        gate_real = jnp.pad(gate_real, ((0, pad), (0, 0)))
        gate_imag = jnp.pad(gate_imag, ((0, pad), (0, 0)))

    text_real = text_real.astype(t_dtype)
    text_imag = text_imag.astype(t_dtype)
    gate_real = gate_real.astype(t_dtype)
    gate_imag = gate_imag.astype(t_dtype)

    w_t = jnp.transpose(conv_w[:, :, 0]).astype(jnp.float32)     # (D_in, D_out)
    bias = conv_b.reshape(1, D).astype(jnp.float32)              # (1, D)

    t_item = jnp.dtype(t_dtype).itemsize

    # ---------------- VMEM budgeting ----------------
    vmem_cap = _vmem_capacity_bytes()                             # physical capacity
    vmem_limit = min(int(0.75 * vmem_cap), 96 * _MIB)             # ~48 MiB on v7x, 96 on v5e/v6e

    # Fuse the conv only while (double-buffered) W^T stays a small slice of VMEM;
    # otherwise output the pooled slab and do the tiny matmul in plain XLA.
    fuse_conv = (2 * D * D * 4) <= max(8 * _MIB, vmem_limit // 8)

    # Keep the gate fully resident (fetched once) while it is small.
    gate_resident_bytes = 2 * 2 * s_pad * D * t_item              # r/i x 2 pipeline buffers
    gate_resident = gate_resident_bytes <= vmem_limit // 4

    resident_bytes = 2 * _MIB                                     # bias / out / acc / slack
    if gate_resident:
        resident_bytes += gate_resident_bytes
    if fuse_conv:
        resident_bytes += 2 * D * D * 4 + 2 * 8 * 128 * 4

    text_budget = max(2 * _MIB, vmem_limit - resident_bytes)      # double-buffered text blocks

    # ---------------- Tile selection ----------------
    # Batch tile: largest 8-multiple divisor of B (<= 256 / VMEM cap at the minimal
    # seq tile), preferring >= 2 batch tiles for the megacore "parallel" axis.
    tb_cap_vmem = max(8, text_budget // (2 * 2 * 8 * D * t_item))
    tb = _pick_batch_tile(B, min(256, tb_cap_vmem))

    # Seq tile: biggest 8-aligned divisor of s_pad whose double-buffered text
    # (+ gate, when not resident) blocks fit the remaining budget.
    bytes_per_ts_row = 2 * 2 * tb * D * t_item
    if not gate_resident:
        bytes_per_ts_row += 2 * 2 * D * t_item
    ts_cap = max(8, text_budget // bytes_per_ts_row)
    ts = _largest_aligned_divisor(s_pad, ts_cap, 8)

    grid = (B // tb, s_pad // ts)

    # ---------------- Specs & call ----------------
    in_specs = [
        pl.BlockSpec((tb, ts, D), lambda bi, si: (bi, si, 0)),    # text real
        pl.BlockSpec((tb, ts, D), lambda bi, si: (bi, si, 0)),    # text imag
    ]
    if gate_resident:
        in_specs += [
            pl.BlockSpec((s_pad, D), lambda bi, si: (0, 0)),      # gate real (resident)
            pl.BlockSpec((s_pad, D), lambda bi, si: (0, 0)),      # gate imag (resident)
        ]
    else:
        in_specs += [
            pl.BlockSpec((ts, D), lambda bi, si: (si, 0)),        # gate real (tiled)
            pl.BlockSpec((ts, D), lambda bi, si: (si, 0)),        # gate imag (tiled)
        ]
    args = [text_real, text_imag, gate_real, gate_imag]
    if fuse_conv:
        in_specs += [
            pl.BlockSpec((D, D), lambda bi, si: (0, 0)),          # conv W^T (resident)
            pl.BlockSpec((1, D), lambda bi, si: (0, 0)),          # bias     (resident)
        ]
        args += [w_t, bias]

    out = pl.pallas_call(
        _make_kernel(1.0 / S, ts, gate_resident, fuse_conv),
        out_shape=jax.ShapeDtypeStruct((B, D), out_dtype if fuse_conv else jnp.float32),
        grid_spec=pltpu.PrefetchScalarGridSpec(
            num_scalar_prefetch=0,
            grid=grid,
            in_specs=in_specs,
            out_specs=pl.BlockSpec((tb, D), lambda bi, si: (bi, 0)),   # lane-dense output
            scratch_shapes=[pltpu.VMEM((tb, D), jnp.float32)],         # pooled accumulator
        ),
        compiler_params=pltpu.CompilerParams(
            dimension_semantics=("parallel", "arbitrary"),             # batch parallel, seq = reduction
            vmem_limit_bytes=int(vmem_limit),
        ),
    )(*args)

    if not fuse_conv:
        # Large d_model: run the kernel-size-1 conv as a plain XLA matmul instead of
        # holding 2*D^2 bytes of W^T resident inside the streaming kernel.
        out = (out @ w_t + bias).astype(out_dtype)

    return out[:, None, :]   # final permute(0, 2, 1): (B, D, 1) -> (B, 1, D)


if __name__ == "__main__":
    # Small shapes consistent with the module: batch=2, seq=s=8, d_model=128.
    B, S, D = 2, 8, 128

    key = jax.random.PRNGKey(0)
    k1, k2, k3, k4, k5 = jax.random.split(key, 5)

    text_real = jax.random.normal(k1, (B, S, D), dtype=jnp.float32)
    text_imag = jax.random.normal(k2, (B, S, D), dtype=jnp.float32)
    select_para = jax.random.normal(k3, (S, D, 2), dtype=jnp.float32)
    conv_w = jax.random.normal(k4, (D, D, 1), dtype=jnp.float32) * 0.05
    conv_b = jax.random.normal(k5, (D,), dtype=jnp.float32) * 0.05

    out = text2image_gate(text_real, text_imag, select_para, conv_w, conv_b)
    out = jax.block_until_ready(out)

    # Plain-JAX reference with identical semantics to the PyTorch forward.
    text_c = text_real + 1j * text_imag
    gate_c = select_para[..., 0] + 1j * select_para[..., 1]
    gated_real = jnp.real(text_c * gate_c[None])                  # (B, S, D)
    pooled = gated_real.mean(axis=1)                              # AvgPool1d(kernel_size=s)
    ref = pooled @ conv_w[:, :, 0].T + conv_b                     # Conv1d(d, d, k=1)
    ref = ref[:, None, :]                                         # permute -> (B, 1, D)

    assert out.shape == (B, 1, D)
    assert out.dtype == jnp.float32
    assert jnp.allclose(out, ref, atol=1e-3, rtol=1e-3), float(jnp.max(jnp.abs(out - ref)))

    print("KERNEL_OK")
</pallas_src>

<mosaic_0001>
module attributes {stable_mosaic.version = 11 : i64} {
  func.func @kernel(%arg0: i32, %arg1: i32, %arg2: memref<2x8x128xf32, #tpu.memory_space<vmem>>, %arg3: memref<2x8x128xf32, #tpu.memory_space<vmem>>, %arg4: memref<8x128xf32, #tpu.memory_space<vmem>>, %arg5: memref<8x128xf32, #tpu.memory_space<vmem>>, %arg6: memref<128x128xf32, #tpu.memory_space<vmem>>, %arg7: memref<1x128xf32, #tpu.memory_space<vmem>>, %arg8: memref<2x128xf32, #tpu.memory_space<vmem>>, %arg9: memref<2x128xf32, #tpu.memory_space<vmem>>) attributes {dimension_semantics = [#tpu.dimension_semantics<parallel>, #tpu.dimension_semantics<arbitrary>], iteration_bounds = array<i64: 1, 1>, scalar_prefetch = 0 : i64, scratch_operands = 1 : i64, tpu.core_type = #tpu.core_type<tc>, window_params = [{transform_indices = @transform_0, window_bounds = array<i64: 2, 8, 128>}, {transform_indices = @transform_1, window_bounds = array<i64: 2, 8, 128>}, {pipeline_mode = #tpu.pipeline_mode<synchronous>, transform_indices = @transform_2, window_bounds = array<i64: 8, 128>}, {pipeline_mode = #tpu.pipeline_mode<synchronous>, transform_indices = @transform_3, window_bounds = array<i64: 8, 128>}, {pipeline_mode = #tpu.pipeline_mode<synchronous>, transform_indices = @transform_4, window_bounds = array<i64: 128, 128>}, {pipeline_mode = #tpu.pipeline_mode<synchronous>, transform_indices = @transform_5, window_bounds = array<i64: 1, 128>}, {transform_indices = @transform_6, window_bounds = array<i64: 2, 128>}]} {
    %c0_i32 = arith.constant 0 : i32
    %0 = arith.cmpi eq, %arg1, %c0_i32 : i32
    %1 = arith.extui %0 : i1 to i32
    %c0_i32_0 = arith.constant 0 : i32
    %2 = arith.cmpi ne, %1, %c0_i32_0 : i32
    scf.if %2 {
      %cst_14 = arith.constant 0.000000e+00 : f32
      %25 = vector.broadcast %cst_14 : f32 to vector<2x128xf32>
      %c0_15 = arith.constant 0 : index
      %c0_16 = arith.constant 0 : index
      %26 = vector.load %arg9[%c0_15, %c0_16] : memref<2x128xf32, #tpu.memory_space<vmem>>, vector<2x128xf32>
      tpu.vector_store %arg9[%c0_15, %c0_16], %25 {strides = array<i32>} : memref<2x128xf32, #tpu.memory_space<vmem>>, vector<2x128xf32>,
    } else {
    }
    %c8_i32 = arith.constant 8 : i32
    %3 = arith.muli %arg1, %c8_i32 : i32
    %4 = tpu.assume_multiple %3, 8 : i32
    %5 = arith.index_cast %4 : i32 to index
    %c0 = arith.constant 0 : index
    %6 = vector.load %arg4[%5, %c0] : memref<8x128xf32, #tpu.memory_space<vmem>>, vector<8x128xf32>
    %7 = arith.index_cast %4 : i32 to index
    %c0_1 = arith.constant 0 : index
    %8 = vector.load %arg5[%7, %c0_1] : memref<8x128xf32, #tpu.memory_space<vmem>>, vector<8x128xf32>
    %c0_2 = arith.constant 0 : index
    %c0_3 = arith.constant 0 : index
    %c0_4 = arith.constant 0 : index
    %9 = vector.load %arg2[%c0_2, %c0_3, %c0_4] : memref<2x8x128xf32, #tpu.memory_space<vmem>>, vector<2x8x128xf32>
    %c0_5 = arith.constant 0 : index
    %c0_6 = arith.constant 0 : index
    %c0_7 = arith.constant 0 : index
    %10 = vector.load %arg3[%c0_5, %c0_6, %c0_7] : memref<2x8x128xf32, #tpu.memory_space<vmem>>, vector<2x8x128xf32>
    %11 = vector.shape_cast %6 : vector<8x128xf32> to vector<1x8x128xf32>
    %12 = vector.shape_cast %8 : vector<8x128xf32> to vector<1x8x128xf32>
    %13 = vector.broadcast %11 : vector<1x8x128xf32> to vector<2x8x128xf32>
    %14 = arith.mulf %9, %13 : vector<2x8x128xf32>
    %15 = vector.broadcast %12 : vector<1x8x128xf32> to vector<2x8x128xf32>
    %16 = arith.mulf %10, %15 : vector<2x8x128xf32>
    %17 = arith.subf %14, %16 : vector<2x8x128xf32>
    %c0_8 = arith.constant 0 : index
    %c0_9 = arith.constant 0 : index
    %18 = vector.load %arg9[%c0_8, %c0_9] : memref<2x128xf32, #tpu.memory_space<vmem>>, vector<2x128xf32>
    %cst = arith.constant dense<0.000000e+00> : vector<2x128xf32>
    %19 = vector.multi_reduction <add>, %17, %cst [1] : vector<2x8x128xf32> to vector<2x128xf32>
    %20 = arith.addf %18, %19 : vector<2x128xf32>
    %c0_10 = arith.constant 0 : index
    %c0_11 = arith.constant 0 : index
    %21 = vector.load %arg9[%c0_10, %c0_11] : memref<2x128xf32, #tpu.memory_space<vmem>>, vector<2x128xf32>
    tpu.vector_store %arg9[%c0_10, %c0_11], %20 {strides = array<i32>} : memref<2x128xf32, #tpu.memory_space<vmem>>, vector<2x128xf32>,
    %c0_i32_12 = arith.constant 0 : i32
    %22 = arith.cmpi eq, %arg1, %c0_i32_12 : i32
    %23 = arith.extui %22 : i1 to i32
    %c0_i32_13 = arith.constant 0 : i32
    %24 = arith.cmpi ne, %23, %c0_i32_13 : i32
    scf.if %24 {
      %c0_14 = arith.constant 0 : index
      %c0_15 = arith.constant 0 : index
      %25 = vector.load %arg9[%c0_14, %c0_15] : memref<2x128xf32, #tpu.memory_space<vmem>>, vector<2x128xf32>
      %cst_16 = arith.constant 1.250000e-01 : f32
      %26 = vector.broadcast %cst_16 : f32 to vector<2x128xf32>
      %27 = arith.mulf %25, %26 : vector<2x128xf32>
      %c0_17 = arith.constant 0 : index
      %c0_18 = arith.constant 0 : index
      %28 = vector.load %arg6[%c0_17, %c0_18] : memref<128x128xf32, #tpu.memory_space<vmem>>, vector<128x128xf32>
      %cst_19 = arith.constant dense<0.000000e+00> : vector<2x128xf32>
      %29 = tpu.matmul %27, %28, %cst_19 {dimension_numbers = #tpu.dot_dimension_numbers<[1], [0], [0], [1], [0, 0, 1, 1], [], []>} : vector<2x128xf32>, vector<128x128xf32>, vector<2x128xf32> -> vector<2x128xf32>
      %c0_20 = arith.constant 0 : index
      %c0_21 = arith.constant 0 : index
      %30 = vector.load %arg7[%c0_20, %c0_21] : memref<1x128xf32, #tpu.memory_space<vmem>>, vector<1x128xf32>
      %31 = vector.broadcast %30 : vector<1x128xf32> to vector<2x128xf32>
      %32 = arith.addf %29, %31 : vector<2x128xf32>
      %c0_22 = arith.constant 0 : index
      %c0_23 = arith.constant 0 : index
      %33 = vector.load %arg8[%c0_22, %c0_23] : memref<2x128xf32, #tpu.memory_space<vmem>>, vector<2x128xf32>
      tpu.vector_store %arg8[%c0_22, %c0_23], %32 {strides = array<i32>} : memref<2x128xf32, #tpu.memory_space<vmem>>, vector<2x128xf32>,
    } else {
    }
    return
  }
  func.func @transform_0(%arg0: i32, %arg1: i32) -> (i32, i32, i32) {
    %c0_i32 = arith.constant 0 : i32
    %c0_i32_0 = arith.constant 0 : i32
    return %arg0, %arg1, %c0_i32 : i32, i32, i32
  }
  func.func @transform_1(%arg0: i32, %arg1: i32) -> (i32, i32, i32) {
    %c0_i32 = arith.constant 0 : i32
    %c0_i32_0 = arith.constant 0 : i32
    return %arg0, %arg1, %c0_i32 : i32, i32, i32
  }
  func.func @transform_2(%arg0: i32, %arg1: i32) -> (i32, i32) {
    %c0_i32 = arith.constant 0 : i32
    %c0_i32_0 = arith.constant 0 : i32
    %c0_i32_1 = arith.constant 0 : i32
    return %c0_i32, %c0_i32_0 : i32, i32
  }
  func.func @transform_3(%arg0: i32, %arg1: i32) -> (i32, i32) {
    %c0_i32 = arith.constant 0 : i32
    %c0_i32_0 = arith.constant 0 : i32
    %c0_i32_1 = arith.constant 0 : i32
    return %c0_i32, %c0_i32_0 : i32, i32
  }
  func.func @transform_4(%arg0: i32, %arg1: i32) -> (i32, i32) {
    %c0_i32 = arith.constant 0 : i32
    %c0_i32_0 = arith.constant 0 : i32
    %c0_i32_1 = arith.constant 0 : i32
    return %c0_i32, %c0_i32_0 : i32, i32
  }
  func.func @transform_5(%arg0: i32, %arg1: i32) -> (i32, i32) {
    %c0_i32 = arith.constant 0 : i32
    %c0_i32_0 = arith.constant 0 : i32
    %c0_i32_1 = arith.constant 0 : i32
    return %c0_i32, %c0_i32_0 : i32, i32
  }
  func.func @transform_6(%arg0: i32, %arg1: i32) -> (i32, i32) {
    %c0_i32 = arith.constant 0 : i32
    %c0_i32_0 = arith.constant 0 : i32
    return %arg0, %c0_i32 : i32, i32
  }
}

</mosaic_0001>

<llo_original>
// kernel: tpu_custom_call.1
$region0: #{tpu_custom_call.1}
  #allocation0 [shape = 'u32[]', space=smem, size = 0x4, offset = 0x4, fixed_abs, tag = 'smem constant byte address 0x4 - core index']
  #allocation1 [shape = 'u32[144,128]{1,0:T(1,128)}', space=vmem, size = 0x12000, scoped, tag = 'internal scratch']
  #allocation2 [shape = 'f32[2,128]{1,0:T(2,128)}', space=vmem, size = 0x400, scoped, tag = 'scratch operand']
  %s0 = inlined_call_operand.hbm [shape: f32[2,8,128], index: 0, kind: input, shape index: {}]
  %s1 = inlined_call_operand.hbm [shape: f32[2,8,128], index: 1, kind: input, shape index: {}]
  %s2 = inlined_call_operand.hbm [shape: f32[8,128], index: 2, kind: input, shape index: {}]
  %s3 = inlined_call_operand.vmem [shape: f32[8,128], index: 3, kind: input, shape index: {}]
  %s4 = inlined_call_operand.hbm [shape: f32[128,128], index: 4, kind: input, shape index: {}]
  %s5 = inlined_call_operand.vmem [shape: f32[1,128], index: 5, kind: input, shape index: {}]
  %s6 = inlined_call_operand.hbm [shape: f32[2,128], index: 6, kind: output, shape index: {}]
  %s7 = sld [smem:[#allocation0]]
  $region58: #{tpu_custom_call.1} parent=0
    _
  %s9 = ssub.s32 1, %s7
  %s10 = scalar_select 0, %s9, %s7
  $region1: #{tpu_custom_call.1} parent=0
    #allocation3 [shape = 'u8[8192]{0}', space=vmem, size = 0x2000, scoped, tag = 'input window, operand 0, single buffered']
    #allocation4 [shape = 's32[1]{0}', space=sflag, size = 0x4, scoped, tag = 'scoped memory for tpu_custom_call.1']
    #allocation5 [shape = 's32[1]{0}', space=sflag, size = 0x4, scoped, tag = 'scoped memory for tpu_custom_call.1']
    #allocation6 [shape = 'u8[8192]{0}', space=vmem, size = 0x2000, scoped, tag = 'input window, operand 1, single buffered']
    #allocation7 [shape = 's32[1]{0}', space=sflag, size = 0x4, scoped, tag = 'scoped memory for tpu_custom_call.1']
    #allocation8 [shape = 'u8[4096]{0}', space=vmem, size = 0x1000, scoped, tag = 'input window, operand 2, single buffered']
    #allocation9 [shape = 'u8[65536]{0}', space=vmem, size = 0x10000, scoped, tag = 'input window, operand 4, single buffered']
    #allocation10 [shape = 's32[1]{0}', space=sflag, size = 0x4, scoped, tag = 'scoped memory for tpu_custom_call.1']
    #allocation11 [shape = 'u8[1024]{0}', space=vmem, size = 0x400, scoped, tag = 'output window, operand 0, single buffered']
    %11 = vsyncpa [#allocation4], 0
    %12 = vsyncpa [#allocation7], 0
    %13 = vsyncpa [#allocation10], 0
    %14 = vsyncpa [#allocation5], 0
    // Predicated region
    $region2: #{tpu_custom_call.1} parent=1 // pred_check
      _
    $region3: #{tpu_custom_call.1} parent=1 // pred_check_branch
      %16 = sbr.rel (0) target = $region5
    $region4: #{tpu_custom_call.1} parent=1 // pred_region
      %s18 = ssub.s32 256, 256
      %19 = vsyncadd [#allocation4], %s18
      %s20 = sshll.u32 [#allocation3], 4
      %s21 = int_to_ptr.vmem [resolvable:$true] %s20
      %26 = dma.hbm_to_vmem [thread:$0]  %s0, 256, %s21, [#allocation4], 128, 128, 8
    $region5: #{tpu_custom_call.1} parent=1 // pred_fallthru
      _
    // Predicated region
    $region6: #{tpu_custom_call.1} parent=1 // pred_check
      _
    $region7: #{tpu_custom_call.1} parent=1 // pred_check_branch
      %28 = sbr.rel (0) target = $region9
    $region8: #{tpu_custom_call.1} parent=1 // pred_region
      %s30 = ssub.s32 256, 256
      %31 = vsyncadd [#allocation7], %s30
      %s32 = sshll.u32 [#allocation6], 4
      %s33 = int_to_ptr.vmem [resolvable:$true] %s32
      %38 = dma.hbm_to_vmem [thread:$0]  %s1, 256, %s33, [#allocation7], 128, 128, 8
    $region9: #{tpu_custom_call.1} parent=1 // pred_fallthru
      _
    // Predicated region
    $region10: #{tpu_custom_call.1} parent=1 // pred_check
      _
    $region11: #{tpu_custom_call.1} parent=1 // pred_check_branch
      %40 = sbr.rel (0) target = $region13
    $region12: #{tpu_custom_call.1} parent=1 // pred_region
      %s42 = ssub.s32 128, 128
      %43 = vsyncadd [#allocation7], %s42
      %s45 = sshll.u32 [#allocation8], 4
      %s46 = int_to_ptr.vmem [resolvable:$true] %s45
      %48 = dma.hbm_to_vmem [thread:$0]  %s2, 128, %s46, [#allocation7]
    $region13: #{tpu_custom_call.1} parent=1 // pred_fallthru
      _
    // Predicated region
    $region14: #{tpu_custom_call.1} parent=1 // pred_check
      _
    $region15: #{tpu_custom_call.1} parent=1 // pred_check_branch
      %50 = sbr.rel (0) target = $region17
    $region16: #{tpu_custom_call.1} parent=1 // pred_region
      _
    $region17: #{tpu_custom_call.1} parent=1 // pred_fallthru
      _
    // Predicated region
    $region18: #{tpu_custom_call.1} parent=1 // pred_check
      _
    $region19: #{tpu_custom_call.1} parent=1 // pred_check_branch
      %52 = sbr.rel (0) target = $region21
    $region20: #{tpu_custom_call.1} parent=1 // pred_region
      %s54 = ssub.s32 2048, 2048
      %55 = vsyncadd [#allocation10], %s54
      %s56 = sshll.u32 [#allocation9], 4
      %s57 = int_to_ptr.vmem [resolvable:$true] %s56
      %62 = dma.hbm_to_vmem [thread:$0]  %s4, 2048, %s57, [#allocation10], 128, 128, 8
    $region21: #{tpu_custom_call.1} parent=1 // pred_fallthru
      _
    // Predicated region
    $region22: #{tpu_custom_call.1} parent=1 // pred_check
      _
    $region23: #{tpu_custom_call.1} parent=1 // pred_check_branch
      %64 = sbr.rel (0) target = $region25
    $region24: #{tpu_custom_call.1} parent=1 // pred_region
      _
    $region25: #{tpu_custom_call.1} parent=1 // pred_fallthru
      _
    // Predicated region
    $region26: #{tpu_custom_call.1} parent=1 // pred_check
      _
    $region27: #{tpu_custom_call.1} parent=1 // pred_check_branch
      %66 = sbr.rel (0) target = $region29
    $region28: #{tpu_custom_call.1} parent=1 // pred_region
      %67 = dma.done [#allocation4], 256
    $region29: #{tpu_custom_call.1} parent=1 // pred_fallthru
      _
    // Predicated region
    $region30: #{tpu_custom_call.1} parent=1 // pred_check
      _
    $region31: #{tpu_custom_call.1} parent=1 // pred_check_branch
      %69 = sbr.rel (0) target = $region33
    $region32: #{tpu_custom_call.1} parent=1 // pred_region
      %70 = dma.done [#allocation7], 256
    $region33: #{tpu_custom_call.1} parent=1 // pred_fallthru
      _
    // Predicated region
    $region34: #{tpu_custom_call.1} parent=1 // pred_check
      _
    $region35: #{tpu_custom_call.1} parent=1 // pred_check_branch
      %72 = sbr.rel (0) target = $region37
    $region36: #{tpu_custom_call.1} parent=1 // pred_region
      %73 = dma.done [#allocation7], 128
    $region37: #{tpu_custom_call.1} parent=1 // pred_fallthru
      _
    // Predicated region
    $region38: #{tpu_custom_call.1} parent=1 // pred_check
      _
    $region39: #{tpu_custom_call.1} parent=1 // pred_check_branch
      %75 = sbr.rel (0) target = $region41
    $region40: #{tpu_custom_call.1} parent=1 // pred_region
      %76 = dma.done [#allocation10], 2048
    $region41: #{tpu_custom_call.1} parent=1 // pred_fallthru
      _
    %p77 = scmp.eq.s32.totalorder 0, 0
    // Predicated region
    $region42: #{tpu_custom_call.1} parent=1 // pred_check
      %p78 = pneg %p77
    $region43: #{tpu_custom_call.1} parent=1 // pred_check_branch
      %80 = sbr.rel (%p78) target = $region45
    $region44: #{tpu_custom_call.1} parent=1 // pred_region
      %81 = vst [vmem:[#allocation2] sm:$0x3] 0.0
    $region45: #{tpu_custom_call.1} parent=1 // pred_fallthru
      _
    %s82 = smul.u32 0, 8
    %s83 = scalar_lea.vmem [#allocation8], %s82
    %v84 = vld [vmem:[%s83] sm:$0xff]
    %s85 = scalar_lea.vmem %s3, %s82
    %v86 = vld [vmem:[%s85] sm:$0xff]
    %v87 = vld [vmem:[#allocation3] sm:$0xff]
    %v88 = vld [vmem:[#allocation3 + $0x8] sm:$0xff]
    %v89 = vld [vmem:[#allocation6] sm:$0xff]
    %v90 = vld [vmem:[#allocation6 + $0x8] sm:$0xff]
    %v91 = vmul.f32 %v87, %v84
    %v92 = vmul.f32 %v88, %v84
    %v93 = vmul.f32 %v89, %v86
    %v94 = vmul.f32 %v90, %v86
    %v95 = vsub.f32 %v91, %v93
    %v96 = vsub.f32 %v92, %v94
    %v97 = vld [vmem:[#allocation2] sm:$0x3]
    %v98 = vrot.slane %v95, 4
    %v99 = vadd.f32 %v95, %v98
    %v100 = vrot.slane %v99, 2
    %v101 = vadd.f32 %v99, %v100
    %v102 = vrot.slane %v101, 1
    %v103 = vadd.f32 %v101, %v102
    %v104 = vrot.slane %v96, 4
    %v105 = vadd.f32 %v96, %v104
    %v106 = vrot.slane %v105, 2
    %v107 = vadd.f32 %v105, %v106
    %v108 = vrot.slane %v107, 1
    %v109 = vadd.f32 %v107, %v108
    %vm112 = vcmask 1041409
    %v113 = vsel %vm112, %v109, %v103
    %v115 = vadd.f32 %v97, %v113
    %116 = vst [vmem:[#allocation2] sm:$0x3] %v115
    // Predicated region
    $region46: #{tpu_custom_call.1} parent=1 // pred_check
      %p117 = pneg %p77
    $region47: #{tpu_custom_call.1} parent=1 // pred_check_branch
      %119 = sbr.rel (%p117) target = $region49
    $region48: #{tpu_custom_call.1} parent=1 // pred_region
      %v120 = vld [vmem:[#allocation2] sm:$0x3]
      %v121 = vmul.f32 %v120, 0.125
      %v122 = vld [vmem:[#allocation9] sm:$0xff]
      %v123 = vld [vmem:[#allocation9 + $0x8] sm:$0xff]
      %v124 = vld [vmem:[#allocation9 + $0x10] sm:$0xff]
      %v125 = vld [vmem:[#allocation9 + $0x18] sm:$0xff]
      %v126 = vld [vmem:[#allocation9 + $0x20] sm:$0xff]
      %v127 = vld [vmem:[#allocation9 + $0x28] sm:$0xff]
      %v128 = vld [vmem:[#allocation9 + $0x30] sm:$0xff]
      %v129 = vld [vmem:[#allocation9 + $0x38] sm:$0xff]
      %v130 = vld [vmem:[#allocation9 + $0x40] sm:$0xff]
      %v131 = vld [vmem:[#allocation9 + $0x48] sm:$0xff]
      %v132 = vld [vmem:[#allocation9 + $0x50] sm:$0xff]
      %v133 = vld [vmem:[#allocation9 + $0x58] sm:$0xff]
      %v134 = vld [vmem:[#allocation9 + $0x60] sm:$0xff]
      %v135 = vld [vmem:[#allocation9 + $0x68] sm:$0xff]
      %v136 = vld [vmem:[#allocation9 + $0x70] sm:$0xff]
      %v137 = vld [vmem:[#allocation9 + $0x78] sm:$0xff]
      %v138 = vld [vmem:[%s5] sm:$0x1]
      %v140 = vlaneseq
      %v141 = vshrl.u32 %v140, 7
      %v142 = vsub.s32 0, %v141
      %v143 = vrot.slane %v138, %v142
      %145 = vmatprep.subr.mxu0 0.0
      %146 = vmatpush1.msra.mxu0 %v122
      %147 = vmatprep.subr.mxu0 0.0
      %148 = vmatpush1.msra.mxu0 %v123
      %149 = vmatprep.subr.mxu0 0.0
      %150 = vmatpush1.msra.mxu0 %v124
      %151 = vmatprep.subr.mxu0 0.0
      %152 = vmatpush1.msra.mxu0 %v125
      %153 = vmatprep.subr.mxu0 0.0
      %154 = vmatpush1.msra.mxu0 %v126
      %155 = vmatprep.subr.mxu0 0.0
      %156 = vmatpush1.msra.mxu0 %v127
      %157 = vmatprep.subr.mxu0 0.0
      %158 = vmatpush1.msra.mxu0 %v128
      %159 = vmatprep.subr.mxu0 0.0
      %160 = vmatpush1.msra.mxu0 %v129
      %161 = vmatprep.subr.mxu0 0.0
      %162 = vmatpush1.msra.mxu0 %v130
      %163 = vmatprep.subr.mxu0 0.0
      %164 = vmatpush1.msra.mxu0 %v131
      %165 = vmatprep.subr.mxu0 0.0
      %166 = vmatpush1.msra.mxu0 %v132
      %167 = vmatprep.subr.mxu0 0.0
      %168 = vmatpush1.msra.mxu0 %v133
      %169 = vmatprep.subr.mxu0 0.0
      %170 = vmatpush1.msra.mxu0 %v134
      %171 = vmatprep.subr.mxu0 0.0
      %172 = vmatpush1.msra.mxu0 %v135
      %173 = vmatprep.subr.mxu0 0.0
      %174 = vmatpush1.msra.mxu0 %v136
      %175 = vmatprep.subr.mxu0 0.0
      %176 = vmatpush1.msra.mxu0 %v137
      %177 = vmatprep.subr.mxu0 0.0
      %178 = vmatpush1.msra.mxu0 0.0
      %179 = vmatprep.subr.mxu0 0.0
      %180 = vmatpush1.msra.mxu0 0.0
      %181 = vmatprep.subr.mxu0 0.0
      %182 = vmatpush1.msra.mxu0 0.0
      %183 = vmatprep.subr.mxu0 0.0
      %184 = vmatpush1.msra.mxu0 0.0
      %185 = vmatprep.subr.mxu0 0.0
      %186 = vmatpush1.msra.mxu0 0.0
      %187 = vmatprep.subr.mxu0 0.0
      %188 = vmatpush1.msra.mxu0 0.0
      %189 = vmatprep.subr.mxu0 0.0
      %190 = vmatpush1.msra.mxu0 0.0
      %191 = vmatprep.subr.mxu0 0.0
      %192 = vmatpush1.msra.mxu0 0.0
      %193 = vmatprep.subr.mxu0 0.0
      %194 = vmatpush1.msra.mxu0 0.0
      %195 = vmatprep.subr.mxu0 0.0
      %196 = vmatpush1.msra.mxu0 0.0
      %197 = vmatprep.subr.mxu0 0.0
      %198 = vmatpush1.msra.mxu0 0.0
      %199 = vmatprep.subr.mxu0 0.0
      %200 = vmatpush1.msra.mxu0 0.0
      %201 = vmatprep.subr.mxu0 0.0
      %202 = vmatpush1.msra.mxu0 0.0
      %203 = vmatprep.subr.mxu0 0.0
      %204 = vmatpush1.msra.mxu0 0.0
      %205 = vmatprep.subr.mxu0 0.0
      %206 = vmatpush1.msra.mxu0 0.0
      %207 = vmatprep.subr.mxu0 0.0
      %208 = vmatpush1.msra.mxu0 0.0
      %209 = vmatprep.mubr.f32.mxu0 0.0
      %210 = vmatmul.mubr.f32.gmra.mrb[0].mxu0 %v121
      %v211 = vpop.f32.mrb[0].mxu0
      %v212 = vadd.f32 %v143, %v211
      %v213 = vpop.f32.mrb[0].mxu0
      %214 = vdwg.mxu0
      %215 = vst [vmem:[#allocation11] sm:$0x3] %v212
    $region49: #{tpu_custom_call.1} parent=1 // pred_fallthru
      _
    // Predicated region
    $region50: #{tpu_custom_call.1} parent=1 // pred_check
      _
    $region51: #{tpu_custom_call.1} parent=1 // pred_check_branch
      %217 = sbr.rel (0) target = $region53
    $region52: #{tpu_custom_call.1} parent=1 // pred_region
      %s219 = ssub.s32 32, 32
      %220 = vsyncadd [#allocation5], %s219
      %s222 = sshll.u32 [#allocation11], 4
      %s223 = int_to_ptr.vmem [resolvable:$true] %s222
      %225 = dma.vmem_to_hbm [thread:$0]  %s223, 32, %s6, [#allocation5]
    $region53: #{tpu_custom_call.1} parent=1 // pred_fallthru
      _
    // Predicated region
    $region54: #{tpu_custom_call.1} parent=1 // pred_check
      _
    $region55: #{tpu_custom_call.1} parent=1 // pred_check_branch
      %227 = sbr.rel (0) target = $region57
    $region56: #{tpu_custom_call.1} parent=1 // pred_region
      %228 = dma.done [#allocation5], 32
    $region57: #{tpu_custom_call.1} parent=1 // pred_fallthru
      _
    %229 = vsyncpa [#allocation4], 1
    %230 = vsyncpa [#allocation7], 1
    %231 = vsyncpa [#allocation10], 1
    %232 = vsyncpa [#allocation5], 1

</llo_original>
